<compile_context>
chip_gen: v7x
topology: tpu7x:2x2x1
jax: 0.10.0
libtpu: 0.0.40
codegen_flags: <defaults>
</compile_context>

<pallas_src>
import functools

import jax
import jax.numpy as jnp
from jax.experimental import pallas as pl
from jax.experimental.pallas import tpu as pltpu


def _rnd(x, m):
    return ((x + m - 1) // m) * m


# ---------------------------------------------------------------------------
# Parameter packing (runs once at init, eager).
# ---------------------------------------------------------------------------
def pack_params(params, obs_shape):
    """Pack PyTorch-layout params into two tile-aligned buffers + static meta.

    Weight matrices are stored "output-major" (out_features, contraction) so
    the kernel computes Y = W @ X with X = (features, positions), positions on
    the lane axis.  Conv weights fold the 2x2 kernel slots into the contraction
    dim; fc1 columns are permuted to the kernel's (position, channel) order.
    """
    C, W, H = obs_shape                      # PyTorch convention (C, W, H)
    F = (H // 8) * (W // 8)                  # final spatial positions per sample
    C2 = params["conv1_w"].shape[0]
    c1p = C + (C % 2)                        # 4*c1p is a multiple of 8
    c2p = _rnd(C2, 8)
    hidden = params["fc3_w"].shape[1]
    hp = _rnd(hidden, 8)

    def conv_w(w, cip, cop):
        # torch (co, ci, kh, kw) -> (cop, 4*cip), contraction cols = (kh, kw, ci)
        co, ci = w.shape[0], w.shape[1]
        w = jnp.transpose(w, (0, 2, 3, 1))                           # (co,kh,kw,ci)
        w = jnp.pad(w, ((0, cop - co), (0, 0), (0, 0), (0, cip - ci)))
        return w.reshape(cop, 4 * cip)

    # fc1: torch rows are (c, hf, wf); the kernel's flattened Z rows are
    # (hf*Wf+wf, c) blocks -> permute + pad channels once here.
    fc1 = params["fc1_w"].reshape(C2, F, 120).transpose(1, 0, 2)     # (p, c, 120)
    fc1 = jnp.pad(fc1, ((0, 0), (0, c2p - C2), (0, 0)))
    fc1 = fc1.reshape(F * c2p, 120).T                                # (120, F*c2p)

    fc2 = params["fc2_w"].T                                          # (84, 120)
    fc3 = jnp.pad(params["fc3_w"].T, ((0, hp - hidden), (0, 0)))     # (hp, 84)

    mats = [conv_w(params["conv1_w"], c1p, c2p),
            conv_w(params["conv2_w"], c2p, c2p),
            conv_w(params["conv3_w"], c2p, c2p),
            fc1, fc2, fc3]
    biases = [jnp.pad(params["conv1_b"], (0, c2p - C2)),
              jnp.pad(params["conv2_b"], (0, c2p - C2)),
              jnp.pad(params["conv3_b"], (0, c2p - C2)),
              params["fc1_b"], params["fc2_b"],
              jnp.pad(params["fc3_b"], (0, hp - hidden))]

    # One bf16 weight slab: row ranges 16-aligned, width a multiple of 128.
    wc = _rnd(max(int(m.shape[1]) for m in mats), 128)
    w_offs, rows = [], 0
    for m in mats:
        w_offs.append(rows)
        rows += _rnd(int(m.shape[0]), 16)
    wbuf = jnp.zeros((rows, wc), jnp.bfloat16)
    for m, o in zip(mats, w_offs):
        wbuf = wbuf.at[o:o + m.shape[0], :m.shape[1]].set(m.astype(jnp.bfloat16))

    # One f32 bias slab (column vectors), row ranges 8-aligned.
    b_offs, rows = [], 0
    for b in biases:
        b_offs.append(rows)
        rows += _rnd(int(b.shape[0]), 8)
    bbuf = jnp.zeros((rows, 1), jnp.float32)
    for b, o in zip(biases, b_offs):
        bbuf = bbuf.at[o:o + b.shape[0], 0].set(b.astype(jnp.float32))

    meta = dict(C=C, c1p=c1p, c2p=c2p, F=F, hidden=hidden, hp=hp,
                w_offs=tuple(w_offs), b_offs=tuple(b_offs))
    return meta, {"wbuf": wbuf, "bbuf": bbuf}


# ---------------------------------------------------------------------------
# Fused kernel: 3x (2x2/s2 conv + ReLU) + Linear/ReLU/Linear/ReLU/Linear.
# ---------------------------------------------------------------------------
def _make_kernel(meta, NB):
    c1p, c2p, F, hp = meta["c1p"], meta["c2p"], meta["F"], meta["hp"]
    ow1, ow2, ow3, of1, of2, of3 = meta["w_offs"]
    ob1, ob2, ob3, obf1, obf2, obf3 = meta["b_offs"]
    P3 = F * NB            # conv3 output positions per batch block
    P2 = 4 * P3            # conv2 output positions per batch block
    bf16, f32 = jnp.bfloat16, jnp.float32

    def kernel(x_ref, w_ref, b_ref, out_ref, x2_ref, x3_ref, z_ref):
        def wmat(off, r, c):
            return w_ref[off:off + r, :c]            # bf16 slab view

        def bias(off, r):
            return b_ref[off:off + r, :]             # (r, 1) f32

        def mm(w, x):
            return jnp.dot(w, x, preferred_element_type=f32)

        # conv1: ONE matmul, contraction = 4*c1p (2x2 slots folded in).
        y = mm(wmat(ow1, c2p, 4 * c1p), x_ref[...])
        y = jnp.maximum(y + bias(ob1, c2p), 0.0)     # (c2p, 16*F*NB) f32

        # Fold the next level's 2x2 slots into the contraction dim: the column
        # layout (s2, s3, hf, wf, n) makes this 4 contiguous slab copies.
        for s in range(4):
            x2_ref[s * c2p:(s + 1) * c2p, :] = y[:, s * P2:(s + 1) * P2]
        y = mm(wmat(ow2, c2p, 4 * c2p), x2_ref[...].astype(bf16))
        y = jnp.maximum(y + bias(ob2, c2p), 0.0)     # (c2p, 4*F*NB)

        for s in range(4):
            x3_ref[s * c2p:(s + 1) * c2p, :] = y[:, s * P3:(s + 1) * P3]
        y = mm(wmat(ow3, c2p, 4 * c2p), x3_ref[...].astype(bf16))
        y = jnp.maximum(y + bias(ob3, c2p), 0.0)     # (c2p, F*NB)

        # Flatten for fc1: Z rows = (spatial position, channel), cols = batch.
        for p in range(F):
            z_ref[p * c2p:(p + 1) * c2p, :] = y[:, p * NB:(p + 1) * NB]

        h = mm(wmat(of1, 120, F * c2p), z_ref[...].astype(bf16))
        h = jnp.maximum(h + bias(obf1, 120), 0.0)    # (120, NB)
        h = mm(wmat(of2, 84, 120), h.astype(bf16))
        h = jnp.maximum(h + bias(obf2, 84), 0.0)     # (84, NB)
        out_ref[...] = mm(wmat(of3, hp, 84), h.astype(bf16)) + bias(obf3, hp)

    return kernel


# ---------------------------------------------------------------------------
# Wrapper: one-time layout plumbing + pallas_call with a parallel batch grid.
# ---------------------------------------------------------------------------
def cnn_layer_forward(meta, arrays, x):
    assert x.ndim >= 3, "only support magent input observation"
    if x.ndim == 3:
        x = x[None]
    N, C, H, W = x.shape
    c1p, c2p, F = meta["c1p"], meta["c2p"], meta["F"]
    hp, hidden = meta["hp"], meta["hidden"]
    Hf, Wf = H // 8, W // 8
    assert Hf * Wf == F and C <= c1p, "input does not match packed obs_shape"

    # The three k=2,s=2 VALID convs only ever see the leading 8*Hf x 8*Wf
    # window, so cropping here is exactly equivalent to PyTorch.
    x = x[:, :, :8 * Hf, :8 * Wf]

    # Batch tiling: single block for small batches; otherwise lane-aligned
    # blocks so the grid pipelines DMAs and shards across TensorCores.
    big_nb = 256 if F <= 8 else 128
    if N <= big_nb:
        NB, nblk = N, 1
    else:
        NB = big_nb
        nblk = (N + NB - 1) // NB
    npad = NB * nblk

    # Quadtree rearrangement (one-time XLA layout plumbing):
    #   rows    = (kh1, kw1, c)                         -> conv1 contraction
    #   columns = (blk, kh2, kw2, kh3, kw3, hf, wf, n)  -> positions, n innermost
    xp = jnp.pad(x, ((0, npad - N), (0, c1p - C), (0, 0), (0, 0)))
    xp = xp.reshape(nblk, NB, c1p, Hf, 2, 2, 2, Wf, 2, 2, 2)
    #               blk0  n1  c2  hf3 k3  k2  k1  wf7 k3  k2  k1
    xp = xp.transpose(6, 10, 2, 0, 5, 9, 4, 8, 3, 7, 1)
    x0 = xp.reshape(4 * c1p, nblk * 16 * F * NB).astype(jnp.bfloat16)

    p1b = 16 * F * NB
    kernel = _make_kernel(meta, NB)
    wbuf, bbuf = arrays["wbuf"], arrays["bbuf"]

    out = pl.pallas_call(
        kernel,
        out_shape=jax.ShapeDtypeStruct((hp, npad), jnp.float32),
        grid=(nblk,),
        in_specs=[
            pl.BlockSpec((4 * c1p, p1b), lambda i: (0, i)),   # streamed input
            pl.BlockSpec(wbuf.shape, lambda i: (0, 0)),        # resident weights
            pl.BlockSpec(bbuf.shape, lambda i: (0, 0)),        # resident biases
        ],
        out_specs=pl.BlockSpec((hp, NB), lambda i: (0, i)),
        scratch_shapes=[
            pltpu.VMEM((4 * c2p, 4 * F * NB), jnp.float32),    # conv2 input (slots folded)
            pltpu.VMEM((4 * c2p, F * NB), jnp.float32),        # conv3 input (slots folded)
            pltpu.VMEM((F * c2p, NB), jnp.float32),            # fc1 input (flattened)
        ],
        compiler_params=pltpu.CompilerParams(
            dimension_semantics=("parallel",),
            vmem_limit_bytes=32 * 1024 * 1024),
    )(x0, wbuf, bbuf)

    # (hidden, batch) -> (batch, hidden): tiny wrapper-side transpose + unpad.
    return out.T[:N, :hidden]


# ---------------------------------------------------------------------------
# Parameters (PyTorch conventions: conv (Cout,Cin,kh,kw), fc stored (in,out)).
# ---------------------------------------------------------------------------
def init_params(key, obs_shape, hidden_size):
    C, W, H = obs_shape  # (input_channel, input_width, input_height)
    assert W >= 15 and H >= 15, "only the large (3x conv k=2 s=2) branch is implemented"
    keys = jax.random.split(key, 6)

    def dense(k, fan_in, shape):
        return jax.random.normal(k, shape, jnp.float32) * jnp.sqrt(2.0 / fan_in)

    C2 = C * 2
    flatten_dim = C2 * (H // 8) * (W // 8)
    return {
        "conv1_w": dense(keys[0], C * 4, (C2, C, 2, 2)),   "conv1_b": jnp.zeros((C2,), jnp.float32),
        "conv2_w": dense(keys[1], C2 * 4, (C2, C2, 2, 2)), "conv2_b": jnp.zeros((C2,), jnp.float32),
        "conv3_w": dense(keys[2], C2 * 4, (C2, C2, 2, 2)), "conv3_b": jnp.zeros((C2,), jnp.float32),
        "fc1_w": dense(keys[3], flatten_dim, (flatten_dim, 120)), "fc1_b": jnp.zeros((120,), jnp.float32),
        "fc2_w": dense(keys[4], 120, (120, 84)),                   "fc2_b": jnp.zeros((84,), jnp.float32),
        "fc3_w": dense(keys[5], 84, (84, hidden_size)),            "fc3_b": jnp.zeros((hidden_size,), jnp.float32),
    }


# Pure-JAX f32 reference of CNNLayer.forward (for correctness check).
def reference_forward(params, x):
    if x.ndim == 3:
        x = x[None]

    def conv(h, w, b):
        y = jax.lax.conv_general_dilated(
            h, w, window_strides=(2, 2), padding="VALID",
            dimension_numbers=("NCHW", "OIHW", "NCHW"))
        return jnp.maximum(y + b[None, :, None, None], 0.0)

    h = conv(x, params["conv1_w"], params["conv1_b"])
    h = conv(h, params["conv2_w"], params["conv2_b"])
    h = conv(h, params["conv3_w"], params["conv3_b"])
    h = h.reshape(h.shape[0], -1)
    h = jnp.maximum(h @ params["fc1_w"] + params["fc1_b"], 0.0)
    h = jnp.maximum(h @ params["fc2_w"] + params["fc2_b"], 0.0)
    return h @ params["fc3_w"] + params["fc3_b"]


if __name__ == "__main__":
    obs_shape = (4, 16, 16)       # (channels, width, height) >= 15 -> 3-conv branch
    hidden_size = 32
    batch = 2

    key = jax.random.PRNGKey(0)
    k_param, k_x = jax.random.split(key)
    params = init_params(k_param, obs_shape, hidden_size)
    meta, arrays = pack_params(params, obs_shape)

    # input: (N, C, H, W)
    x = jax.random.normal(
        k_x, (batch, obs_shape[0], obs_shape[2], obs_shape[1]), jnp.float32)

    fwd = jax.jit(functools.partial(cnn_layer_forward, meta))
    out = jax.block_until_ready(fwd(arrays, x))

    ref = jax.block_until_ready(reference_forward(params, x))
    assert out.shape == (batch, hidden_size), out.shape
    assert jnp.all(jnp.isfinite(out))
    # bf16 MXU operands with f32 accumulation: small relative error vs f32 ref.
    assert jnp.allclose(out, ref, rtol=5e-2, atol=5e-2), \
        float(jnp.max(jnp.abs(out - ref)))
    print("KERNEL_OK")
</pallas_src>

<mosaic_0001>
module attributes {stable_mosaic.version = 11 : i64} {
  func.func @kernel(%arg0: i32, %arg1: memref<16x128xbf16, #tpu.memory_space<vmem>>, %arg2: memref<304x128xbf16, #tpu.memory_space<vmem>>, %arg3: memref<264x1xf32, #tpu.memory_space<vmem>>, %arg4: memref<32x2xf32, #tpu.memory_space<vmem>>, %arg5: memref<32x32xf32, #tpu.memory_space<vmem>>, %arg6: memref<32x8xf32, #tpu.memory_space<vmem>>, %arg7: memref<32x2xf32, #tpu.memory_space<vmem>>) attributes {dimension_semantics = [#tpu.dimension_semantics<parallel>], iteration_bounds = array<i64: 1>, scalar_prefetch = 0 : i64, scratch_operands = 3 : i64, tpu.core_type = #tpu.core_type<tc>, window_params = [{transform_indices = @transform_0, window_bounds = array<i64: 16, 128>}, {pipeline_mode = #tpu.pipeline_mode<synchronous>, transform_indices = @transform_1, window_bounds = array<i64: 304, 128>}, {pipeline_mode = #tpu.pipeline_mode<synchronous>, transform_indices = @transform_2, window_bounds = array<i64: 264, 1>}, {transform_indices = @transform_3, window_bounds = array<i64: 32, 2>}]} {
    %c0 = arith.constant 0 : index
    %c0_0 = arith.constant 0 : index
    %0 = vector.load %arg2[%c0, %c0_0] : memref<304x128xbf16, #tpu.memory_space<vmem>>, vector<8x16xbf16>
    %c0_1 = arith.constant 0 : index
    %c0_2 = arith.constant 0 : index
    %1 = vector.load %arg1[%c0_1, %c0_2] : memref<16x128xbf16, #tpu.memory_space<vmem>>, vector<16x128xbf16>
    %cst = arith.constant dense<0.000000e+00> : vector<8x128xf32>
    %2 = tpu.matmul %0, %1, %cst {dimension_numbers = #tpu.dot_dimension_numbers<[1], [0], [0], [1], [0, 0, 1, 1], [], []>} : vector<8x16xbf16>, vector<16x128xbf16>, vector<8x128xf32> -> vector<8x128xf32>
    %c0_3 = arith.constant 0 : index
    %c0_4 = arith.constant 0 : index
    %3 = vector.load %arg3[%c0_3, %c0_4] : memref<264x1xf32, #tpu.memory_space<vmem>>, vector<8x1xf32>
    %4 = vector.broadcast %3 : vector<8x1xf32> to vector<8x128xf32>
    %5 = arith.addf %2, %4 : vector<8x128xf32>
    %cst_5 = arith.constant 0.000000e+00 : f32
    %6 = vector.broadcast %cst_5 : f32 to vector<8x128xf32>
    %7 = arith.maximumf %5, %6 : vector<8x128xf32>
    %8 = vector.extract_strided_slice %7 {offsets = [0, 0], sizes = [8, 32], strides = [1, 1]} : vector<8x128xf32> to vector<8x32xf32>
    %c0_6 = arith.constant 0 : index
    %c0_7 = arith.constant 0 : index
    %9 = vector.load %arg5[%c0_6, %c0_7] : memref<32x32xf32, #tpu.memory_space<vmem>>, vector<8x32xf32>
    tpu.vector_store %arg5[%c0_6, %c0_7], %8 {strides = array<i32>} : memref<32x32xf32, #tpu.memory_space<vmem>>, vector<8x32xf32>,
    %10 = vector.extract_strided_slice %7 {offsets = [0, 32], sizes = [8, 32], strides = [1, 1]} : vector<8x128xf32> to vector<8x32xf32>
    %c8 = arith.constant 8 : index
    %c0_8 = arith.constant 0 : index
    %11 = vector.load %arg5[%c8, %c0_8] : memref<32x32xf32, #tpu.memory_space<vmem>>, vector<8x32xf32>
    tpu.vector_store %arg5[%c8, %c0_8], %10 {strides = array<i32>} : memref<32x32xf32, #tpu.memory_space<vmem>>, vector<8x32xf32>,
    %12 = vector.extract_strided_slice %7 {offsets = [0, 64], sizes = [8, 32], strides = [1, 1]} : vector<8x128xf32> to vector<8x32xf32>
    %c16 = arith.constant 16 : index
    %c0_9 = arith.constant 0 : index
    %13 = vector.load %arg5[%c16, %c0_9] : memref<32x32xf32, #tpu.memory_space<vmem>>, vector<8x32xf32>
    tpu.vector_store %arg5[%c16, %c0_9], %12 {strides = array<i32>} : memref<32x32xf32, #tpu.memory_space<vmem>>, vector<8x32xf32>,
    %14 = vector.extract_strided_slice %7 {offsets = [0, 96], sizes = [8, 32], strides = [1, 1]} : vector<8x128xf32> to vector<8x32xf32>
    %c24 = arith.constant 24 : index
    %c0_10 = arith.constant 0 : index
    %15 = vector.load %arg5[%c24, %c0_10] : memref<32x32xf32, #tpu.memory_space<vmem>>, vector<8x32xf32>
    tpu.vector_store %arg5[%c24, %c0_10], %14 {strides = array<i32>} : memref<32x32xf32, #tpu.memory_space<vmem>>, vector<8x32xf32>,
    %c16_11 = arith.constant 16 : index
    %c0_12 = arith.constant 0 : index
    %16 = vector.load %arg2[%c16_11, %c0_12] : memref<304x128xbf16, #tpu.memory_space<vmem>>, vector<8x32xbf16>
    %c0_13 = arith.constant 0 : index
    %c0_14 = arith.constant 0 : index
    %17 = vector.load %arg5[%c0_13, %c0_14] : memref<32x32xf32, #tpu.memory_space<vmem>>, vector<32x32xf32>
    %18 = arith.truncf %17 : vector<32x32xf32> to vector<32x32xbf16>
    %cst_15 = arith.constant dense<0.000000e+00> : vector<8x32xf32>
    %19 = tpu.matmul %16, %18, %cst_15 {dimension_numbers = #tpu.dot_dimension_numbers<[1], [0], [0], [1], [0, 0, 1, 1], [], []>} : vector<8x32xbf16>, vector<32x32xbf16>, vector<8x32xf32> -> vector<8x32xf32>
    %c8_16 = arith.constant 8 : index
    %c0_17 = arith.constant 0 : index
    %20 = vector.load %arg3[%c8_16, %c0_17] : memref<264x1xf32, #tpu.memory_space<vmem>>, vector<8x1xf32>
    %21 = vector.broadcast %20 : vector<8x1xf32> to vector<8x32xf32>
    %22 = arith.addf %19, %21 : vector<8x32xf32>
    %cst_18 = arith.constant 0.000000e+00 : f32
    %23 = vector.broadcast %cst_18 : f32 to vector<8x32xf32>
    %24 = arith.maximumf %22, %23 : vector<8x32xf32>
    %25 = vector.extract_strided_slice %24 {offsets = [0, 0], sizes = [8, 8], strides = [1, 1]} : vector<8x32xf32> to vector<8x8xf32>
    %c0_19 = arith.constant 0 : index
    %c0_20 = arith.constant 0 : index
    %26 = vector.load %arg6[%c0_19, %c0_20] : memref<32x8xf32, #tpu.memory_space<vmem>>, vector<8x8xf32>
    tpu.vector_store %arg6[%c0_19, %c0_20], %25 {strides = array<i32>} : memref<32x8xf32, #tpu.memory_space<vmem>>, vector<8x8xf32>,
    %27 = vector.extract_strided_slice %24 {offsets = [0, 8], sizes = [8, 8], strides = [1, 1]} : vector<8x32xf32> to vector<8x8xf32>
    %c8_21 = arith.constant 8 : index
    %c0_22 = arith.constant 0 : index
    %28 = vector.load %arg6[%c8_21, %c0_22] : memref<32x8xf32, #tpu.memory_space<vmem>>, vector<8x8xf32>
    tpu.vector_store %arg6[%c8_21, %c0_22], %27 {strides = array<i32>} : memref<32x8xf32, #tpu.memory_space<vmem>>, vector<8x8xf32>,
    %29 = vector.extract_strided_slice %24 {offsets = [0, 16], sizes = [8, 8], strides = [1, 1]} : vector<8x32xf32> to vector<8x8xf32>
    %c16_23 = arith.constant 16 : index
    %c0_24 = arith.constant 0 : index
    %30 = vector.load %arg6[%c16_23, %c0_24] : memref<32x8xf32, #tpu.memory_space<vmem>>, vector<8x8xf32>
    tpu.vector_store %arg6[%c16_23, %c0_24], %29 {strides = array<i32>} : memref<32x8xf32, #tpu.memory_space<vmem>>, vector<8x8xf32>,
    %31 = vector.extract_strided_slice %24 {offsets = [0, 24], sizes = [8, 8], strides = [1, 1]} : vector<8x32xf32> to vector<8x8xf32>
    %c24_25 = arith.constant 24 : index
    %c0_26 = arith.constant 0 : index
    %32 = vector.load %arg6[%c24_25, %c0_26] : memref<32x8xf32, #tpu.memory_space<vmem>>, vector<8x8xf32>
    tpu.vector_store %arg6[%c24_25, %c0_26], %31 {strides = array<i32>} : memref<32x8xf32, #tpu.memory_space<vmem>>, vector<8x8xf32>,
    %c32 = arith.constant 32 : index
    %c0_27 = arith.constant 0 : index
    %33 = vector.load %arg2[%c32, %c0_27] : memref<304x128xbf16, #tpu.memory_space<vmem>>, vector<8x32xbf16>
    %c0_28 = arith.constant 0 : index
    %c0_29 = arith.constant 0 : index
    %34 = vector.load %arg6[%c0_28, %c0_29] : memref<32x8xf32, #tpu.memory_space<vmem>>, vector<32x8xf32>
    %35 = arith.truncf %34 : vector<32x8xf32> to vector<32x8xbf16>
    %cst_30 = arith.constant dense<0.000000e+00> : vector<8x8xf32>
    %36 = tpu.matmul %33, %35, %cst_30 {dimension_numbers = #tpu.dot_dimension_numbers<[1], [0], [0], [1], [0, 0, 1, 1], [], []>} : vector<8x32xbf16>, vector<32x8xbf16>, vector<8x8xf32> -> vector<8x8xf32>
    %c16_31 = arith.constant 16 : index
    %c0_32 = arith.constant 0 : index
    %37 = vector.load %arg3[%c16_31, %c0_32] : memref<264x1xf32, #tpu.memory_space<vmem>>, vector<8x1xf32>
    %38 = vector.broadcast %37 : vector<8x1xf32> to vector<8x8xf32>
    %39 = arith.addf %36, %38 : vector<8x8xf32>
    %cst_33 = arith.constant 0.000000e+00 : f32
    %40 = vector.broadcast %cst_33 : f32 to vector<8x8xf32>
    %41 = arith.maximumf %39, %40 : vector<8x8xf32>
    %42 = vector.extract_strided_slice %41 {offsets = [0, 0], sizes = [8, 2], strides = [1, 1]} : vector<8x8xf32> to vector<8x2xf32>
    %c0_34 = arith.constant 0 : index
    %c0_35 = arith.constant 0 : index
    %43 = vector.load %arg7[%c0_34, %c0_35] : memref<32x2xf32, #tpu.memory_space<vmem>>, vector<8x2xf32>
    tpu.vector_store %arg7[%c0_34, %c0_35], %42 {strides = array<i32>} : memref<32x2xf32, #tpu.memory_space<vmem>>, vector<8x2xf32>,
    %44 = vector.extract_strided_slice %41 {offsets = [0, 2], sizes = [8, 2], strides = [1, 1]} : vector<8x8xf32> to vector<8x2xf32>
    %c8_36 = arith.constant 8 : index
    %c0_37 = arith.constant 0 : index
    %45 = vector.load %arg7[%c8_36, %c0_37] : memref<32x2xf32, #tpu.memory_space<vmem>>, vector<8x2xf32>
    tpu.vector_store %arg7[%c8_36, %c0_37], %44 {strides = array<i32>} : memref<32x2xf32, #tpu.memory_space<vmem>>, vector<8x2xf32>,
    %46 = vector.extract_strided_slice %41 {offsets = [0, 4], sizes = [8, 2], strides = [1, 1]} : vector<8x8xf32> to vector<8x2xf32>
    %c16_38 = arith.constant 16 : index
    %c0_39 = arith.constant 0 : index
    %47 = vector.load %arg7[%c16_38, %c0_39] : memref<32x2xf32, #tpu.memory_space<vmem>>, vector<8x2xf32>
    tpu.vector_store %arg7[%c16_38, %c0_39], %46 {strides = array<i32>} : memref<32x2xf32, #tpu.memory_space<vmem>>, vector<8x2xf32>,
    %48 = vector.extract_strided_slice %41 {offsets = [0, 6], sizes = [8, 2], strides = [1, 1]} : vector<8x8xf32> to vector<8x2xf32>
    %c24_40 = arith.constant 24 : index
    %c0_41 = arith.constant 0 : index
    %49 = vector.load %arg7[%c24_40, %c0_41] : memref<32x2xf32, #tpu.memory_space<vmem>>, vector<8x2xf32>
    tpu.vector_store %arg7[%c24_40, %c0_41], %48 {strides = array<i32>} : memref<32x2xf32, #tpu.memory_space<vmem>>, vector<8x2xf32>,
    %c48 = arith.constant 48 : index
    %c0_42 = arith.constant 0 : index
    %50 = vector.load %arg2[%c48, %c0_42] : memref<304x128xbf16, #tpu.memory_space<vmem>>, vector<120x32xbf16>
    %c0_43 = arith.constant 0 : index
    %c0_44 = arith.constant 0 : index
    %51 = vector.load %arg7[%c0_43, %c0_44] : memref<32x2xf32, #tpu.memory_space<vmem>>, vector<32x2xf32>
    %52 = arith.truncf %51 : vector<32x2xf32> to vector<32x2xbf16>
    %cst_45 = arith.constant dense<0.000000e+00> : vector<120x2xf32>
    %53 = tpu.matmul %50, %52, %cst_45 {dimension_numbers = #tpu.dot_dimension_numbers<[1], [0], [0], [1], [0, 0, 1, 1], [], []>} : vector<120x32xbf16>, vector<32x2xbf16>, vector<120x2xf32> -> vector<120x2xf32>
    %c24_46 = arith.constant 24 : index
    %c0_47 = arith.constant 0 : index
    %54 = vector.load %arg3[%c24_46, %c0_47] : memref<264x1xf32, #tpu.memory_space<vmem>>, vector<120x1xf32>
    %55 = vector.broadcast %54 : vector<120x1xf32> to vector<120x2xf32>
    %56 = arith.addf %53, %55 : vector<120x2xf32>
    %cst_48 = arith.constant 0.000000e+00 : f32
    %57 = vector.broadcast %cst_48 : f32 to vector<120x2xf32>
    %58 = arith.maximumf %56, %57 : vector<120x2xf32>
    %c176 = arith.constant 176 : index
    %c0_49 = arith.constant 0 : index
    %59 = vector.load %arg2[%c176, %c0_49] : memref<304x128xbf16, #tpu.memory_space<vmem>>, vector<84x120xbf16>
    %60 = arith.truncf %58 : vector<120x2xf32> to vector<120x2xbf16>
    %cst_50 = arith.constant dense<0.000000e+00> : vector<84x2xf32>
    %61 = tpu.matmul %59, %60, %cst_50 {dimension_numbers = #tpu.dot_dimension_numbers<[1], [0], [0], [1], [0, 0, 1, 1], [], []>} : vector<84x120xbf16>, vector<120x2xbf16>, vector<84x2xf32> -> vector<84x2xf32>
    %c144 = arith.constant 144 : index
    %c0_51 = arith.constant 0 : index
    %62 = vector.load %arg3[%c144, %c0_51] : memref<264x1xf32, #tpu.memory_space<vmem>>, vector<84x1xf32>
    %63 = vector.broadcast %62 : vector<84x1xf32> to vector<84x2xf32>
    %64 = arith.addf %61, %63 : vector<84x2xf32>
    %cst_52 = arith.constant 0.000000e+00 : f32
    %65 = vector.broadcast %cst_52 : f32 to vector<84x2xf32>
    %66 = arith.maximumf %64, %65 : vector<84x2xf32>
    %c272 = arith.constant 272 : index
    %c0_53 = arith.constant 0 : index
    %67 = vector.load %arg2[%c272, %c0_53] : memref<304x128xbf16, #tpu.memory_space<vmem>>, vector<32x84xbf16>
    %68 = arith.truncf %66 : vector<84x2xf32> to vector<84x2xbf16>
    %cst_54 = arith.constant dense<0.000000e+00> : vector<32x2xf32>
    %69 = tpu.matmul %67, %68, %cst_54 {dimension_numbers = #tpu.dot_dimension_numbers<[1], [0], [0], [1], [0, 0, 1, 1], [], []>} : vector<32x84xbf16>, vector<84x2xbf16>, vector<32x2xf32> -> vector<32x2xf32>
    %c232 = arith.constant 232 : index
    %c0_55 = arith.constant 0 : index
    %70 = vector.load %arg3[%c232, %c0_55] : memref<264x1xf32, #tpu.memory_space<vmem>>, vector<32x1xf32>
    %71 = vector.broadcast %70 : vector<32x1xf32> to vector<32x2xf32>
    %72 = arith.addf %69, %71 : vector<32x2xf32>
    %c0_56 = arith.constant 0 : index
    %c0_57 = arith.constant 0 : index
    %73 = vector.load %arg4[%c0_56, %c0_57] : memref<32x2xf32, #tpu.memory_space<vmem>>, vector<32x2xf32>
    tpu.vector_store %arg4[%c0_56, %c0_57], %72 {strides = array<i32>} : memref<32x2xf32, #tpu.memory_space<vmem>>, vector<32x2xf32>,
    return
  }
  func.func @transform_0(%arg0: i32) -> (i32, i32) {
    %c0_i32 = arith.constant 0 : i32
    %c0_i32_0 = arith.constant 0 : i32
    return %c0_i32, %arg0 : i32, i32
  }
  func.func @transform_1(%arg0: i32) -> (i32, i32) {
    %c0_i32 = arith.constant 0 : i32
    %c0_i32_0 = arith.constant 0 : i32
    %c0_i32_1 = arith.constant 0 : i32
    return %c0_i32, %c0_i32_0 : i32, i32
  }
  func.func @transform_2(%arg0: i32) -> (i32, i32) {
    %c0_i32 = arith.constant 0 : i32
    %c0_i32_0 = arith.constant 0 : i32
    %c0_i32_1 = arith.constant 0 : i32
    return %c0_i32, %c0_i32_0 : i32, i32
  }
  func.func @transform_3(%arg0: i32) -> (i32, i32) {
    %c0_i32 = arith.constant 0 : i32
    %c0_i32_0 = arith.constant 0 : i32
    return %c0_i32, %arg0 : i32, i32
  }
}

</mosaic_0001>

<llo_original>
// kernel: cnn_layer_forward.1
$region0: #{cnn_layer_forward.1}
  #allocation0 [shape = 'u32[]', space=smem, size = 0x4, offset = 0x4, fixed_abs, tag = 'smem constant byte address 0x4 - core index']
  #allocation1 [shape = 'u32[144,128]{1,0:T(1,128)}', space=vmem, size = 0x12000, scoped, tag = 'internal scratch']
  #allocation2 [shape = 'f32[32,32]{1,0:T(8,128)}', space=vmem, size = 0x4000, scoped, tag = 'scratch operand']
  #allocation3 [shape = 'f32[32,8]{1,0:T(8,128)}', space=vmem, size = 0x4000, scoped, tag = 'scratch operand']
  #allocation4 [shape = 'f32[32,2]{1,0:T(8,128)}', space=vmem, size = 0x4000, scoped, tag = 'scratch operand']
  %s0 = inlined_call_operand.vmem [shape: bf16[16,128], index: 0, kind: input, shape index: {}]
  %s1 = inlined_call_operand.vmem [shape: bf16[304,128], index: 1, kind: input, shape index: {}]
  %s2 = inlined_call_operand.vmem [shape: f32[264,1], index: 2, kind: input, shape index: {}]
  %s3 = inlined_call_operand.vmem [shape: f32[32,2], index: 3, kind: output, shape index: {}]
  %s4 = sld [smem:[#allocation0]]
  $region22: #{cnn_layer_forward.1} parent=0
    _
  %s6 = ssub.s32 1, %s4
  %s7 = scalar_select 0, %s6, %s4
  // Predicated region
  $region2: #{cnn_layer_forward.1} parent=0 // pred_check
    _
  $region3: #{cnn_layer_forward.1} parent=0 // pred_check_branch
    %9 = sbr.rel (0) target = $region5
  $region4: #{cnn_layer_forward.1} parent=0 // pred_region
    _
  $region5: #{cnn_layer_forward.1} parent=0 // pred_fallthru
    _
  // Predicated region
  $region6: #{cnn_layer_forward.1} parent=0 // pred_check
    _
  $region7: #{cnn_layer_forward.1} parent=0 // pred_check_branch
    %11 = sbr.rel (0) target = $region9
  $region8: #{cnn_layer_forward.1} parent=0 // pred_region
    _
  $region9: #{cnn_layer_forward.1} parent=0 // pred_fallthru
    _
  // Predicated region
  $region10: #{cnn_layer_forward.1} parent=0 // pred_check
    _
  $region11: #{cnn_layer_forward.1} parent=0 // pred_check_branch
    %13 = sbr.rel (0) target = $region13
  $region12: #{cnn_layer_forward.1} parent=0 // pred_region
    _
  $region13: #{cnn_layer_forward.1} parent=0 // pred_fallthru
    _
  %v15 = vld [vmem:[%s1] sm:$0xf]
  %v16 = vld [vmem:[%s0] sm:$0xf]
  %v17 = vld [vmem:[%s0 + $0x4] sm:$0xf]
  %v18 = vld [vmem:[%s2] sm:$0xff]
  %20 = vset.pattern.permute.xlu0 0
  %21 = vperm.xlu0 %20, %v18
  %v22 = vpop.permute.xlu0 %21
  %v26 = vunpack.c.l.b16 %v16
  %v27 = vunpack.c.l.b16 %v17
  %v28 = vpack.c.b16 %v27, %v26
  %vm30 = vcmask 130048
  %v32 = vsel %vm30, %v15, 0
  %34 = vmatprep.subr.bf16.mxu0 0
  %35 = vmatpush1.bf16.msra.mxu0 %v28
  %36 = vmatprep.subr.bf16.mxu0 0
  %37 = vmatpush1.bf16.msra.mxu0 0
  %38 = vmatprep.subr.bf16.mxu0 0
  %39 = vmatpush1.bf16.msra.mxu0 0
  %40 = vmatprep.subr.bf16.mxu0 0
  %41 = vmatpush1.bf16.msra.mxu0 0
  %42 = vmatprep.subr.bf16.mxu0 0
  %43 = vmatpush1.bf16.msra.mxu0 0
  %44 = vmatprep.subr.bf16.mxu0 0
  %45 = vmatpush1.bf16.msra.mxu0 0
  %46 = vmatprep.subr.bf16.mxu0 0
  %47 = vmatpush1.bf16.msra.mxu0 0
  %48 = vmatprep.subr.bf16.mxu0 0
  %49 = vmatpush1.bf16.msra.mxu0 0
  %50 = vmatprep.subr.bf16.mxu0 0
  %51 = vmatpush1.bf16.msra.mxu0 0
  %52 = vmatprep.subr.bf16.mxu0 0
  %53 = vmatpush1.bf16.msra.mxu0 0
  %54 = vmatprep.subr.bf16.mxu0 0
  %55 = vmatpush1.bf16.msra.mxu0 0
  %56 = vmatprep.subr.bf16.mxu0 0
  %57 = vmatpush1.bf16.msra.mxu0 0
  %58 = vmatprep.subr.bf16.mxu0 0
  %59 = vmatpush1.bf16.msra.mxu0 0
  %60 = vmatprep.subr.bf16.mxu0 0
  %61 = vmatpush1.bf16.msra.mxu0 0
  %62 = vmatprep.subr.bf16.mxu0 0
  %63 = vmatpush1.bf16.msra.mxu0 0
  %64 = vmatprep.subr.bf16.mxu0 0
  %65 = vmatpush1.bf16.msra.mxu0 0
  %66 = vmatprep.mubr.bf16.mxu0 0
  %67 = vmatmul.mubr.bf16.gmra.mrb[0].mxu0 %v32
  %v68 = vpop.f32.mrb[0].mxu0
  %v69 = vadd.f32 %v22, %v68
  %v70 = vpop.f32.mrb[0].mxu0
  %v71 = vpop.f32.mrb[0].mxu0
  %v72 = vpop.f32.mrb[0].mxu0
  %73 = vdwg.mxu0
  %v74 = vmax.f32 %v69, 0.0
  %vm75 = vcmask 261120
  %76 = vst.msk [vmem:[#allocation2] sm:$0xff] %vm75, %v74
  %78 = vrot.lane.b32.xlu0 %v74, 96
  %v79 = vpop.permute.xlu0 %78
  %81 = vst.msk [vmem:[#allocation2 + $0x8] sm:$0xff] %vm75, %v79
  %82 = vrot.lane.b32.xlu0 %v74, 64
  %v83 = vpop.permute.xlu0 %82
  %85 = vst.msk [vmem:[#allocation2 + $0x10] sm:$0xff] %vm75, %v83
  %86 = vrot.lane.b32.xlu0 %v74, 32
  %v87 = vpop.permute.xlu0 %86
  %89 = vst.msk [vmem:[#allocation2 + $0x18] sm:$0xff] %vm75, %v87
  %v90 = vld [vmem:[%s1 + $0x8] sm:$0xf]
  %v91 = vld [vmem:[#allocation2] sm:$0xff]
  %v92 = vld [vmem:[#allocation2 + $0x8] sm:$0xff]
  %v93 = vld [vmem:[#allocation2 + $0x10] sm:$0xff]
  %v94 = vld [vmem:[#allocation2 + $0x18] sm:$0xff]
  %v95 = vpack.c.bf16 %v92, %v91
  %v96 = vpack.c.bf16 %v94, %v93
  %v97 = vld [vmem:[%s2 + $0x8] sm:$0xff]
  %99 = vset.pattern.permute.xlu0 0
  %100 = vperm.xlu0 %99, %v97
  %v101 = vpop.permute.xlu0 %100
  %v104 = vsel %vm75, %v90, 0
  %106 = vmatprep.subr.bf16.mxu0 0
  %107 = vmatpush1.bf16.msra.mxu0 %v95
  %108 = vmatprep.subr.bf16.mxu0 0
  %109 = vmatpush1.bf16.msra.mxu0 %v96
  %110 = vmatprep.subr.bf16.mxu0 0
  %111 = vmatpush1.bf16.msra.mxu0 0
  %112 = vmatprep.subr.bf16.mxu0 0
  %113 = vmatpush1.bf16.msra.mxu0 0
  %114 = vmatprep.subr.bf16.mxu0 0
  %115 = vmatpush1.bf16.msra.mxu0 0
  %116 = vmatprep.subr.bf16.mxu0 0
  %117 = vmatpush1.bf16.msra.mxu0 0
  %118 = vmatprep.subr.bf16.mxu0 0
  %119 = vmatpush1.bf16.msra.mxu0 0
  %120 = vmatprep.subr.bf16.mxu0 0
  %121 = vmatpush1.bf16.msra.mxu0 0
  %122 = vmatprep.subr.bf16.mxu0 0
  %123 = vmatpush1.bf16.msra.mxu0 0
  %124 = vmatprep.subr.bf16.mxu0 0
  %125 = vmatpush1.bf16.msra.mxu0 0
  %126 = vmatprep.subr.bf16.mxu0 0
  %127 = vmatpush1.bf16.msra.mxu0 0
  %128 = vmatprep.subr.bf16.mxu0 0
  %129 = vmatpush1.bf16.msra.mxu0 0
  %130 = vmatprep.subr.bf16.mxu0 0
  %131 = vmatpush1.bf16.msra.mxu0 0
  %132 = vmatprep.subr.bf16.mxu0 0
  %133 = vmatpush1.bf16.msra.mxu0 0
  %134 = vmatprep.subr.bf16.mxu0 0
  %135 = vmatpush1.bf16.msra.mxu0 0
  %136 = vmatprep.subr.bf16.mxu0 0
  %137 = vmatpush1.bf16.msra.mxu0 0
  %138 = vmatprep.mubr.bf16.mxu0 0
  %139 = vmatmul.mubr.bf16.gmra.mrb[0].mxu0 %v104
  %v140 = vpop.f32.mrb[0].mxu0
  %v141 = vadd.f32 %v101, %v140
  %v142 = vpop.f32.mrb[0].mxu0
  %v143 = vpop.f32.mrb[0].mxu0
  %v144 = vpop.f32.mrb[0].mxu0
  %145 = vdwg.mxu0
  %v146 = vmax.f32 %v141, 0.0
  %vm147 = vcmask 64512
  %148 = vst.msk [vmem:[#allocation3] sm:$0xff] %vm147, %v146
  %150 = vrot.lane.b32.xlu0 %v146, 120
  %v151 = vpop.permute.xlu0 %150
  %153 = vst.msk [vmem:[#allocation3 + $0x8] sm:$0xff] %vm147, %v151
  %154 = vrot.lane.b32.xlu0 %v146, 112
  %v155 = vpop.permute.xlu0 %154
  %157 = vst.msk [vmem:[#allocation3 + $0x10] sm:$0xff] %vm147, %v155
  %158 = vrot.lane.b32.xlu0 %v146, 104
  %v159 = vpop.permute.xlu0 %158
  %161 = vst.msk [vmem:[#allocation3 + $0x18] sm:$0xff] %vm147, %v159
  %v162 = vld [vmem:[%s1 + $0x10] sm:$0xf]
  %v163 = vld [vmem:[#allocation3] sm:$0xff]
  %v164 = vld [vmem:[#allocation3 + $0x8] sm:$0xff]
  %v165 = vld [vmem:[#allocation3 + $0x10] sm:$0xff]
  %v166 = vld [vmem:[#allocation3 + $0x18] sm:$0xff]
  %v167 = vpack.c.bf16 %v164, %v163
  %v168 = vpack.c.bf16 %v166, %v165
  %v169 = vld [vmem:[%s2 + $0x10] sm:$0xff]
  %171 = vset.pattern.permute.xlu0 0
  %172 = vperm.xlu0 %171, %v169
  %v173 = vpop.permute.xlu0 %172
  %v176 = vsel %vm75, %v162, 0
  %178 = vmatprep.subr.bf16.mxu0 0
  %179 = vmatpush1.bf16.msra.mxu0 %v167
  %180 = vmatprep.subr.bf16.mxu0 0
  %181 = vmatpush1.bf16.msra.mxu0 %v168
  %182 = vmatprep.subr.bf16.mxu0 0
  %183 = vmatpush1.bf16.msra.mxu0 0
  %184 = vmatprep.subr.bf16.mxu0 0
  %185 = vmatpush1.bf16.msra.mxu0 0
  %186 = vmatprep.subr.bf16.mxu0 0
  %187 = vmatpush1.bf16.msra.mxu0 0
  %188 = vmatprep.subr.bf16.mxu0 0
  %189 = vmatpush1.bf16.msra.mxu0 0
  %190 = vmatprep.subr.bf16.mxu0 0
  %191 = vmatpush1.bf16.msra.mxu0 0
  %192 = vmatprep.subr.bf16.mxu0 0
  %193 = vmatpush1.bf16.msra.mxu0 0
  %194 = vmatprep.subr.bf16.mxu0 0
  %195 = vmatpush1.bf16.msra.mxu0 0
  %196 = vmatprep.subr.bf16.mxu0 0
  %197 = vmatpush1.bf16.msra.mxu0 0
  %198 = vmatprep.subr.bf16.mxu0 0
  %199 = vmatpush1.bf16.msra.mxu0 0
  %200 = vmatprep.subr.bf16.mxu0 0
  %201 = vmatpush1.bf16.msra.mxu0 0
  %202 = vmatprep.subr.bf16.mxu0 0
  %203 = vmatpush1.bf16.msra.mxu0 0
  %204 = vmatprep.subr.bf16.mxu0 0
  %205 = vmatpush1.bf16.msra.mxu0 0
  %206 = vmatprep.subr.bf16.mxu0 0
  %207 = vmatpush1.bf16.msra.mxu0 0
  %208 = vmatprep.subr.bf16.mxu0 0
  %209 = vmatpush1.bf16.msra.mxu0 0
  %210 = vmatprep.mubr.bf16.mxu0 0
  %211 = vmatmul.mubr.bf16.gmra.mrb[0].mxu0 %v176
  %v212 = vpop.f32.mrb[0].mxu0
  %v213 = vadd.f32 %v173, %v212
  %v214 = vpop.f32.mrb[0].mxu0
  %v215 = vpop.f32.mrb[0].mxu0
  %v216 = vpop.f32.mrb[0].mxu0
  %217 = vdwg.mxu0
  %v218 = vmax.f32 %v213, 0.0
  %vm219 = vcmask 15360
  %220 = vst.msk [vmem:[#allocation4] sm:$0xff] %vm219, %v218
  %222 = vrot.lane.b32.xlu0 %v218, 126
  %v223 = vpop.permute.xlu0 %222
  %225 = vst.msk [vmem:[#allocation4 + $0x8] sm:$0xff] %vm219, %v223
  %226 = vrot.lane.b32.xlu0 %v218, 124
  %v227 = vpop.permute.xlu0 %226
  %229 = vst.msk [vmem:[#allocation4 + $0x10] sm:$0xff] %vm219, %v227
  %230 = vrot.lane.b32.xlu0 %v218, 122
  %v231 = vpop.permute.xlu0 %230
  %233 = vst.msk [vmem:[#allocation4 + $0x18] sm:$0xff] %vm219, %v231
  %v234 = vld [vmem:[%s1 + $0x18] sm:$0xf]
  %v235 = vld [vmem:[%s1 + $0x1c] sm:$0xf]
  %v236 = vld [vmem:[%s1 + $0x20] sm:$0xf]
  %v237 = vld [vmem:[%s1 + $0x24] sm:$0xf]
  %v238 = vld [vmem:[%s1 + $0x28] sm:$0xf]
  %v239 = vld [vmem:[%s1 + $0x2c] sm:$0xf]
  %v240 = vld [vmem:[%s1 + $0x30] sm:$0xf]
  %v241 = vld [vmem:[%s1 + $0x34] sm:$0xf]
  %v242 = vld [vmem:[%s1 + $0x38] sm:$0xf]
  %v243 = vld [vmem:[%s1 + $0x3c] sm:$0xf]
  %v244 = vld [vmem:[%s1 + $0x40] sm:$0xf]
  %v245 = vld [vmem:[%s1 + $0x44] sm:$0xf]
  %v246 = vld [vmem:[%s1 + $0x48] sm:$0xf]
  %v247 = vld [vmem:[%s1 + $0x4c] sm:$0xf]
  %v248 = vld [vmem:[%s1 + $0x50] sm:$0xf]
  %v249 = vld [vmem:[#allocation4] sm:$0xff]
  %v250 = vld [vmem:[#allocation4 + $0x8] sm:$0xff]
  %v251 = vld [vmem:[#allocation4 + $0x10] sm:$0xff]
  %v252 = vld [vmem:[#allocation4 + $0x18] sm:$0xff]
  %v253 = vpack.c.bf16 %v250, %v249
  %v254 = vpack.c.bf16 %v252, %v251
  %v255 = vld [vmem:[%s2 + $0x18] sm:$0xff]
  %v256 = vld [vmem:[%s2 + $0x20] sm:$0xff]
  %v257 = vld [vmem:[%s2 + $0x28] sm:$0xff]
  %v258 = vld [vmem:[%s2 + $0x30] sm:$0xff]
  %v259 = vld [vmem:[%s2 + $0x38] sm:$0xff]
  %v260 = vld [vmem:[%s2 + $0x40] sm:$0xff]
  %v261 = vld [vmem:[%s2 + $0x48] sm:$0xff]
  %v262 = vld [vmem:[%s2 + $0x50] sm:$0xff]
  %v263 = vld [vmem:[%s2 + $0x58] sm:$0xff]
  %v264 = vld [vmem:[%s2 + $0x60] sm:$0xff]
  %v265 = vld [vmem:[%s2 + $0x68] sm:$0xff]
  %v266 = vld [vmem:[%s2 + $0x70] sm:$0xff]
  %v267 = vld [vmem:[%s2 + $0x78] sm:$0xff]
  %v268 = vld [vmem:[%s2 + $0x80] sm:$0xff]
  %v269 = vld [vmem:[%s2 + $0x88] sm:$0xff]
  %271 = vset.pattern.permute.xlu0 0
  %272 = vperm.xlu0 %271, %v255
  %v273 = vpop.permute.xlu0 %272
  %276 = vset.pattern.permute.xlu0 0
  %277 = vperm.xlu0 %276, %v256
  %v278 = vpop.permute.xlu0 %277
  %281 = vset.pattern.permute.xlu0 0
  %282 = vperm.xlu0 %281, %v257
  %v283 = vpop.permute.xlu0 %282
  %286 = vset.pattern.permute.xlu0 0
  %287 = vperm.xlu0 %286, %v258
  %v288 = vpop.permute.xlu0 %287
  %291 = vset.pattern.permute.xlu0 0
  %292 = vperm.xlu0 %291, %v259
  %v293 = vpop.permute.xlu0 %292
  %296 = vset.pattern.permute.xlu0 0
  %297 = vperm.xlu0 %296, %v260
  %v298 = vpop.permute.xlu0 %297
  %301 = vset.pattern.permute.xlu0 0
  %302 = vperm.xlu0 %301, %v261
  %v303 = vpop.permute.xlu0 %302
  %306 = vset.pattern.permute.xlu0 0
  %307 = vperm.xlu0 %306, %v262
  %v308 = vpop.permute.xlu0 %307
  %311 = vset.pattern.permute.xlu0 0
  %312 = vperm.xlu0 %311, %v263
  %v313 = vpop.permute.xlu0 %312
  %316 = vset.pattern.permute.xlu0 0
  %317 = vperm.xlu0 %316, %v264
  %v318 = vpop.permute.xlu0 %317
  %321 = vset.pattern.permute.xlu0 0
  %322 = vperm.xlu0 %321, %v265
  %v323 = vpop.permute.xlu0 %322
  %326 = vset.pattern.permute.xlu0 0
  %327 = vperm.xlu0 %326, %v266
  %v328 = vpop.permute.xlu0 %327
  %331 = vset.pattern.permute.xlu0 0
  %332 = vperm.xlu0 %331, %v267
  %v333 = vpop.permute.xlu0 %332
  %336 = vset.pattern.permute.xlu0 0
  %337 = vperm.xlu0 %336, %v268
  %v338 = vpop.permute.xlu0 %337
  %341 = vset.pattern.permute.xlu0 0
  %342 = vperm.xlu0 %341, %v269
  %v343 = vpop.permute.xlu0 %342
  %v360 = vunpack.c.l.b16 %v234
  %v361 = vunpack.c.l.b16 %v235
  %v362 = vunpack.c.l.b16 %v236
  %v363 = vunpack.c.l.b16 %v237
  %v364 = vunpack.c.l.b16 %v238
  %v365 = vunpack.c.l.b16 %v239
  %v366 = vunpack.c.l.b16 %v240
  %v367 = vunpack.c.l.b16 %v241
  %v368 = vunpack.c.l.b16 %v242
  %v369 = vunpack.c.l.b16 %v243
  %v370 = vunpack.c.l.b16 %v244
  %v371 = vunpack.c.l.b16 %v245
  %v372 = vunpack.c.l.b16 %v246
  %v373 = vunpack.c.l.b16 %v247
  %v374 = vunpack.c.l.b16 %v248
  %v375 = vpack.c.b16 %v361, %v360
  %v376 = vpack.c.b16 %v363, %v362
  %v377 = vpack.c.b16 %v365, %v364
  %v378 = vpack.c.b16 %v367, %v366
  %v379 = vpack.c.b16 %v369, %v368
  %v380 = vpack.c.b16 %v371, %v370
  %v381 = vpack.c.b16 %v373, %v372
  %v382 = vpack.c.b16 %v374, %v374
  %v384 = vsel %vm75, %v375, 0
  %v387 = vsel %vm75, %v376, 0
  %v390 = vsel %vm75, %v377, 0
  %v393 = vsel %vm75, %v378, 0
  %v396 = vsel %vm75, %v379, 0
  %v399 = vsel %vm75, %v380, 0
  %v402 = vsel %vm75, %v381, 0
  %v405 = vsel %vm75, %v382, 0
  %407 = vmatprep.subr.bf16.mxu0 0
  %408 = vmatpush1.bf16.msra.mxu0 %v253
  %409 = vmatprep.subr.bf16.mxu0 0
  %410 = vmatpush1.bf16.msra.mxu0 %v254
  %411 = vmatprep.subr.bf16.mxu0 0
  %412 = vmatpush1.bf16.msra.mxu0 0
  %413 = vmatprep.subr.bf16.mxu0 0
  %414 = vmatpush1.bf16.msra.mxu0 0
  %415 = vmatprep.subr.bf16.mxu0 0
  %416 = vmatpush1.bf16.msra.mxu0 0
  %417 = vmatprep.subr.bf16.mxu0 0
  %418 = vmatpush1.bf16.msra.mxu0 0
  %419 = vmatprep.subr.bf16.mxu0 0
  %420 = vmatpush1.bf16.msra.mxu0 0
  %421 = vmatprep.subr.bf16.mxu0 0
  %422 = vmatpush1.bf16.msra.mxu0 0
  %423 = vmatprep.subr.bf16.mxu0 0
  %424 = vmatpush1.bf16.msra.mxu0 0
  %425 = vmatprep.subr.bf16.mxu0 0
  %426 = vmatpush1.bf16.msra.mxu0 0
  %427 = vmatprep.subr.bf16.mxu0 0
  %428 = vmatpush1.bf16.msra.mxu0 0
  %429 = vmatprep.subr.bf16.mxu0 0
  %430 = vmatpush1.bf16.msra.mxu0 0
  %431 = vmatprep.subr.bf16.mxu0 0
  %432 = vmatpush1.bf16.msra.mxu0 0
  %433 = vmatprep.subr.bf16.mxu0 0
  %434 = vmatpush1.bf16.msra.mxu0 0
  %435 = vmatprep.subr.bf16.mxu0 0
  %436 = vmatpush1.bf16.msra.mxu0 0
  %437 = vmatprep.subr.bf16.mxu0 0
  %438 = vmatpush1.bf16.msra.mxu0 0
  %439 = vmatprep.mubr.bf16.mxu0 0
  %440 = vmatmul.mubr.bf16.gmra.mrb[0].mxu0 %v384
  %v441 = vpop.f32.mrb[0].mxu0
  %v442 = vadd.f32 %v273, %v441
  %v443 = vpop.f32.mrb[0].mxu0
  %v444 = vpop.f32.mrb[0].mxu0
  %v445 = vadd.f32 %v278, %v444
  %v446 = vpop.f32.mrb[0].mxu0
  %447 = vmatprep.mubr.bf16.mxu0 0
  %448 = vmatmul.mubr.bf16.gmra.mrb[0].mxu0 %v387
  %v449 = vpop.f32.mrb[0].mxu0
  %v450 = vadd.f32 %v283, %v449
  %v451 = vpop.f32.mrb[0].mxu0
  %v452 = vpop.f32.mrb[0].mxu0
  %v453 = vadd.f32 %v288, %v452
  %v454 = vpop.f32.mrb[0].mxu0
  %455 = vmatprep.mubr.bf16.mxu0 0
  %456 = vmatmul.mubr.bf16.gmra.mrb[0].mxu0 %v390
  %v457 = vpop.f32.mrb[0].mxu0
  %v458 = vadd.f32 %v293, %v457
  %v459 = vpop.f32.mrb[0].mxu0
  %v460 = vpop.f32.mrb[0].mxu0
  %v461 = vadd.f32 %v298, %v460
  %v462 = vpop.f32.mrb[0].mxu0
  %463 = vmatprep.mubr.bf16.mxu0 0
  %464 = vmatmul.mubr.bf16.gmra.mrb[0].mxu0 %v393
  %v465 = vpop.f32.mrb[0].mxu0
  %v466 = vadd.f32 %v303, %v465
  %v467 = vpop.f32.mrb[0].mxu0
  %v468 = vpop.f32.mrb[0].mxu0
  %v469 = vadd.f32 %v308, %v468
  %v470 = vpop.f32.mrb[0].mxu0
  %471 = vmatprep.mubr.bf16.mxu0 0
  %472 = vmatmul.mubr.bf16.gmra.mrb[0].mxu0 %v396
  %v473 = vpop.f32.mrb[0].mxu0
  %v474 = vadd.f32 %v313, %v473
  %v475 = vpop.f32.mrb[0].mxu0
  %v476 = vpop.f32.mrb[0].mxu0
  %v477 = vadd.f32 %v318, %v476
  %v478 = vpop.f32.mrb[0].mxu0
  %479 = vmatprep.mubr.bf16.mxu0 0
  %480 = vmatmul.mubr.bf16.gmra.mrb[0].mxu0 %v399
  %v481 = vpop.f32.mrb[0].mxu0
  %v482 = vadd.f32 %v323, %v481
  %v483 = vpop.f32.mrb[0].mxu0
  %v484 = vpop.f32.mrb[0].mxu0
  %v485 = vadd.f32 %v328, %v484
  %v486 = vpop.f32.mrb[0].mxu0
  %487 = vmatprep.mubr.bf16.mxu0 0
  %488 = vmatmul.mubr.bf16.gmra.mrb[0].mxu0 %v402
  %v489 = vpop.f32.mrb[0].mxu0
  %v490 = vadd.f32 %v333, %v489
  %v491 = vpop.f32.mrb[0].mxu0
  %v492 = vpop.f32.mrb[0].mxu0
  %v493 = vadd.f32 %v338, %v492
  %v494 = vpop.f32.mrb[0].mxu0
  %495 = vmatprep.mubr.bf16.mxu0 0
  %496 = vmatmul.mubr.bf16.gmra.mrb[0].mxu0 %v405
  %v497 = vpop.f32.mrb[0].mxu0
  %v498 = vadd.f32 %v343, %v497
  %v499 = vpop.f32.mrb[0].mxu0
  %v500 = vpop.f32.mrb[0].mxu0
  %v501 = vpop.f32.mrb[0].mxu0
  %502 = vdwg.mxu0
  %v503 = vmax.f32 %v442, 0.0
  %v504 = vmax.f32 %v445, 0.0
  %v505 = vmax.f32 %v450, 0.0
  %v506 = vmax.f32 %v453, 0.0
  %v507 = vmax.f32 %v458, 0.0
  %v508 = vmax.f32 %v461, 0.0
  %v509 = vmax.f32 %v466, 0.0
  %v510 = vmax.f32 %v469, 0.0
  %v511 = vmax.f32 %v474, 0.0
  %v512 = vmax.f32 %v477, 0.0
  %v513 = vmax.f32 %v482, 0.0
  %v514 = vmax.f32 %v485, 0.0
  %v515 = vmax.f32 %v490, 0.0
  %v516 = vmax.f32 %v493, 0.0
  %v517 = vmax.f32 %v498, 0.0
  %v518 = vld [vmem:[%s1 + $0x58] sm:$0xf]
  %v519 = vld [vmem:[%s1 + $0x5c] sm:$0xf]
  %v520 = vld [vmem:[%s1 + $0x60] sm:$0xf]
  %v521 = vld [vmem:[%s1 + $0x64] sm:$0xf]
  %v522 = vld [vmem:[%s1 + $0x68] sm:$0xf]
  %v523 = vld [vmem:[%s1 + $0x6c] sm:$0xf]
  %v524 = vld [vmem:[%s1 + $0x70] sm:$0xf]
  %v525 = vld [vmem:[%s1 + $0x74] sm:$0xf]
  %v526 = vld [vmem:[%s1 + $0x78] sm:$0xf]
  %v527 = vld [vmem:[%s1 + $0x7c] sm:$0xf]
  %v528 = vld [vmem:[%s1 + $0x80] sm:$0x3]
  %v529 = vpack.c.bf16 %v504, %v503
  %v530 = vpack.c.bf16 %v506, %v505
  %v531 = vpack.c.bf16 %v508, %v507
  %v532 = vpack.c.bf16 %v510, %v509
  %v533 = vpack.c.bf16 %v512, %v511
  %v534 = vpack.c.bf16 %v514, %v513
  %v535 = vpack.c.bf16 %v516, %v515
  %v536 = vpack.c.bf16 %v517, %v517
  %v537 = vld [vmem:[%s2 + $0x90] sm:$0xff]
  %v538 = vld [vmem:[%s2 + $0x98] sm:$0xff]
  %v539 = vld [vmem:[%s2 + $0xa0] sm:$0xff]
  %v540 = vld [vmem:[%s2 + $0xa8] sm:$0xff]
  %v541 = vld [vmem:[%s2 + $0xb0] sm:$0xff]
  %v542 = vld [vmem:[%s2 + $0xb8] sm:$0xff]
  %v543 = vld [vmem:[%s2 + $0xc0] sm:$0xff]
  %v544 = vld [vmem:[%s2 + $0xc8] sm:$0xff]
  %v545 = vld [vmem:[%s2 + $0xd0] sm:$0xff]
  %v546 = vld [vmem:[%s2 + $0xd8] sm:$0xff]
  %v547 = vld [vmem:[%s2 + $0xe0] sm:$0xf]
  %549 = vset.pattern.permute.xlu0 0
  %550 = vperm.xlu0 %549, %v537
  %v551 = vpop.permute.xlu0 %550
  %554 = vset.pattern.permute.xlu0 0
  %555 = vperm.xlu0 %554, %v538
  %v556 = vpop.permute.xlu0 %555
  %559 = vset.pattern.permute.xlu0 0
  %560 = vperm.xlu0 %559, %v539
  %v561 = vpop.permute.xlu0 %560
  %564 = vset.pattern.permute.xlu0 0
  %565 = vperm.xlu0 %564, %v540
  %v566 = vpop.permute.xlu0 %565
  %569 = vset.pattern.permute.xlu0 0
  %570 = vperm.xlu0 %569, %v541
  %v571 = vpop.permute.xlu0 %570
  %574 = vset.pattern.permute.xlu0 0
  %575 = vperm.xlu0 %574, %v542
  %v576 = vpop.permute.xlu0 %575
  %579 = vset.pattern.permute.xlu0 0
  %580 = vperm.xlu0 %579, %v543
  %v581 = vpop.permute.xlu0 %580
  %584 = vset.pattern.permute.xlu0 0
  %585 = vperm.xlu0 %584, %v544
  %v586 = vpop.permute.xlu0 %585
  %589 = vset.pattern.permute.xlu0 0
  %590 = vperm.xlu0 %589, %v545
  %v591 = vpop.permute.xlu0 %590
  %594 = vset.pattern.permute.xlu0 0
  %595 = vperm.xlu0 %594, %v546
  %v596 = vpop.permute.xlu0 %595
  %599 = vset.pattern.permute.xlu0 0
  %600 = vperm.xlu0 %599, %v547
  %v601 = vpop.permute.xlu0 %600
  %v614 = vunpack.c.l.b16 %v518
  %v615 = vunpack.c.l.b16 %v519
  %v616 = vunpack.c.l.b16 %v520
  %v617 = vunpack.c.l.b16 %v521
  %v618 = vunpack.c.l.b16 %v522
  %v619 = vunpack.c.l.b16 %v523
  %v620 = vunpack.c.l.b16 %v524
  %v621 = vunpack.c.l.b16 %v525
  %v622 = vunpack.c.l.b16 %v526
  %v623 = vunpack.c.l.b16 %v527
  %v624 = vunpack.c.l.b16 %v528
  %v625 = vpack.c.b16 %v615, %v614
  %v626 = vpack.c.b16 %v617, %v616
  %v627 = vpack.c.b16 %v619, %v618
  %v628 = vpack.c.b16 %v621, %v620
  %v629 = vpack.c.b16 %v623, %v622
  %v630 = vpack.c.b16 %v624, %v624
  %vm631 = vcmask 982016
  %v633 = vsel %vm631, %v625, 0
  %v636 = vsel %vm631, %v626, 0
  %v639 = vsel %vm631, %v627, 0
  %v642 = vsel %vm631, %v628, 0
  %v645 = vsel %vm631, %v629, 0
  %v648 = vsel %vm631, %v630, 0
  %vm650 = vcmask 1043456
  %v652 = vsel %vm650, %v536, 0
  %654 = vmatprep.subr.bf16.mxu0 0
  %655 = vmatpush1.bf16.msra.mxu0 %v529
  %656 = vmatprep.subr.bf16.mxu0 0
  %657 = vmatpush1.bf16.msra.mxu0 %v530
  %658 = vmatprep.subr.bf16.mxu0 0
  %659 = vmatpush1.bf16.msra.mxu0 %v531
  %660 = vmatprep.subr.bf16.mxu0 0
  %661 = vmatpush1.bf16.msra.mxu0 %v532
  %662 = vmatprep.subr.bf16.mxu0 0
  %663 = vmatpush1.bf16.msra.mxu0 %v533
  %664 = vmatprep.subr.bf16.mxu0 0
  %665 = vmatpush1.bf16.msra.mxu0 %v534
  %666 = vmatprep.subr.bf16.mxu0 0
  %667 = vmatpush1.bf16.msra.mxu0 %v535
  %668 = vmatprep.subr.bf16.mxu0 0
  %669 = vmatpush1.bf16.msra.mxu0 %v652
  %670 = vmatprep.subr.bf16.mxu0 0
  %671 = vmatpush1.bf16.msra.mxu0 0
  %672 = vmatprep.subr.bf16.mxu0 0
  %673 = vmatpush1.bf16.msra.mxu0 0
  %674 = vmatprep.subr.bf16.mxu0 0
  %675 = vmatpush1.bf16.msra.mxu0 0
  %676 = vmatprep.subr.bf16.mxu0 0
  %677 = vmatpush1.bf16.msra.mxu0 0
  %678 = vmatprep.subr.bf16.mxu0 0
  %679 = vmatpush1.bf16.msra.mxu0 0
  %680 = vmatprep.subr.bf16.mxu0 0
  %681 = vmatpush1.bf16.msra.mxu0 0
  %682 = vmatprep.subr.bf16.mxu0 0
  %683 = vmatpush1.bf16.msra.mxu0 0
  %684 = vmatprep.subr.bf16.mxu0 0
  %685 = vmatpush1.bf16.msra.mxu0 0
  %686 = vmatprep.mubr.bf16.mxu0 0
  %687 = vmatmul.mubr.bf16.gmra.mrb[0].mxu0 %v633
  %v688 = vpop.f32.mrb[0].mxu0
  %v689 = vadd.f32 %v551, %v688
  %v690 = vpop.f32.mrb[0].mxu0
  %v691 = vpop.f32.mrb[0].mxu0
  %v692 = vadd.f32 %v556, %v691
  %v693 = vpop.f32.mrb[0].mxu0
  %694 = vmatprep.mubr.bf16.mxu0 0
  %695 = vmatmul.mubr.bf16.gmra.mrb[0].mxu0 %v636
  %v696 = vpop.f32.mrb[0].mxu0
  %v697 = vadd.f32 %v561, %v696
  %v698 = vpop.f32.mrb[0].mxu0
  %v699 = vpop.f32.mrb[0].mxu0
  %v700 = vadd.f32 %v566, %v699
  %v701 = vpop.f32.mrb[0].mxu0
  %702 = vmatprep.mubr.bf16.mxu0 0
  %703 = vmatmul.mubr.bf16.gmra.mrb[0].mxu0 %v639
  %v704 = vpop.f32.mrb[0].mxu0
  %v705 = vadd.f32 %v571, %v704
  %v706 = vpop.f32.mrb[0].mxu0
  %v707 = vpop.f32.mrb[0].mxu0
  %v708 = vadd.f32 %v576, %v707
  %v709 = vpop.f32.mrb[0].mxu0
  %710 = vmatprep.mubr.bf16.mxu0 0
  %711 = vmatmul.mubr.bf16.gmra.mrb[0].mxu0 %v642
  %v712 = vpop.f32.mrb[0].mxu0
  %v713 = vadd.f32 %v581, %v712
  %v714 = vpop.f32.mrb[0].mxu0
  %v715 = vpop.f32.mrb[0].mxu0
  %v716 = vadd.f32 %v586, %v715
  %v717 = vpop.f32.mrb[0].mxu0
  %718 = vmatprep.mubr.bf16.mxu0 0
  %719 = vmatmul.mubr.bf16.gmra.mrb[0].mxu0 %v645
  %v720 = vpop.f32.mrb[0].mxu0
  %v721 = vadd.f32 %v591, %v720
  %v722 = vpop.f32.mrb[0].mxu0
  %v723 = vpop.f32.mrb[0].mxu0
  %v724 = vadd.f32 %v596, %v723
  %v725 = vpop.f32.mrb[0].mxu0
  %726 = vmatprep.mubr.bf16.mxu0 0
  %727 = vmatmul.mubr.bf16.gmra.mrb[0].mxu0 %v648
  %v728 = vpop.f32.mrb[0].mxu0
  %v729 = vadd.f32 %v601, %v728
  %v730 = vpop.f32.mrb[0].mxu0
  %v731 = vpop.f32.mrb[0].mxu0
  %v732 = vpop.f32.mrb[0].mxu0
  %733 = vdwg.mxu0
  %v734 = vmax.f32 %v689, 0.0
  %v735 = vmax.f32 %v692, 0.0
  %v736 = vmax.f32 %v697, 0.0
  %v737 = vmax.f32 %v700, 0.0
  %v738 = vmax.f32 %v705, 0.0
  %v739 = vmax.f32 %v708, 0.0
  %v740 = vmax.f32 %v713, 0.0
  %v741 = vmax.f32 %v716, 0.0
  %v742 = vmax.f32 %v721, 0.0
  %v743 = vmax.f32 %v724, 0.0
  %v744 = vmax.f32 %v729, 0.0
  %v745 = vld [vmem:[%s1 + $0x88] sm:$0xf]
  %v746 = vld [vmem:[%s1 + $0x8c] sm:$0xf]
  %v747 = vld [vmem:[%s1 + $0x90] sm:$0xf]
  %v748 = vld [vmem:[%s1 + $0x94] sm:$0xf]
  %v749 = vpack.c.bf16 %v735, %v734
  %v750 = vpack.c.bf16 %v737, %v736
  %v751 = vpack.c.bf16 %v739, %v738
  %v752 = vpack.c.bf16 %v741, %v740
  %v753 = vpack.c.bf16 %v743, %v742
  %v754 = vpack.c.bf16 %v744, %v744
  %v755 = vld [vmem:[%s2 + $0xe8] sm:$0xff]
  %v756 = vld [vmem:[%s2 + $0xf0] sm:$0xff]
  %v757 = vld [vmem:[%s2 + $0xf8] sm:$0xff]
  %v758 = vld [vmem:[%s2 + $0x100] sm:$0xff]
  %760 = vset.pattern.permute.xlu0 0
  %761 = vperm.xlu0 %760, %v755
  %v762 = vpop.permute.xlu0 %761
  %765 = vset.pattern.permute.xlu0 0
  %766 = vperm.xlu0 %765, %v756
  %v767 = vpop.permute.xlu0 %766
  %770 = vset.pattern.permute.xlu0 0
  %771 = vperm.xlu0 %770, %v757
  %v772 = vpop.permute.xlu0 %771
  %775 = vset.pattern.permute.xlu0 0
  %776 = vperm.xlu0 %775, %v758
  %v777 = vpop.permute.xlu0 %776
  %v783 = vunpack.c.l.b16 %v745
  %v784 = vunpack.c.l.b16 %v746
  %v785 = vunpack.c.l.b16 %v747
  %v786 = vunpack.c.l.b16 %v748
  %v787 = vpack.c.b16 %v784, %v783
  %v788 = vpack.c.b16 %v786, %v785
  %vm789 = vcmask 687104
  %v791 = vsel %vm789, %v787, 0
  %v794 = vsel %vm789, %v788, 0
  %vm796 = vcmask 1041408
  %v798 = vsel %vm796, %v754, 0
  %800 = vmatprep.subr.bf16.mxu0 0
  %801 = vmatpush1.bf16.msra.mxu0 %v749
  %802 = vmatprep.subr.bf16.mxu0 0
  %803 = vmatpush1.bf16.msra.mxu0 %v750
  %804 = vmatprep.subr.bf16.mxu0 0
  %805 = vmatpush1.bf16.msra.mxu0 %v751
  %806 = vmatprep.subr.bf16.mxu0 0
  %807 = vmatpush1.bf16.msra.mxu0 %v752
  %808 = vmatprep.subr.bf16.mxu0 0
  %809 = vmatpush1.bf16.msra.mxu0 %v753
  %810 = vmatprep.subr.bf16.mxu0 0
  %811 = vmatpush1.bf16.msra.mxu0 %v798
  %812 = vmatprep.subr.bf16.mxu0 0
  %813 = vmatpush1.bf16.msra.mxu0 0
  %814 = vmatprep.subr.bf16.mxu0 0
  %815 = vmatpush1.bf16.msra.mxu0 0
  %816 = vmatprep.subr.bf16.mxu0 0
  %817 = vmatpush1.bf16.msra.mxu0 0
  %818 = vmatprep.subr.bf16.mxu0 0
  %819 = vmatpush1.bf16.msra.mxu0 0
  %820 = vmatprep.subr.bf16.mxu0 0
  %821 = vmatpush1.bf16.msra.mxu0 0
  %822 = vmatprep.subr.bf16.mxu0 0
  %823 = vmatpush1.bf16.msra.mxu0 0
  %824 = vmatprep.subr.bf16.mxu0 0
  %825 = vmatpush1.bf16.msra.mxu0 0
  %826 = vmatprep.subr.bf16.mxu0 0
  %827 = vmatpush1.bf16.msra.mxu0 0
  %828 = vmatprep.subr.bf16.mxu0 0
  %829 = vmatpush1.bf16.msra.mxu0 0
  %830 = vmatprep.subr.bf16.mxu0 0
  %831 = vmatpush1.bf16.msra.mxu0 0
  %832 = vmatprep.mubr.bf16.mxu0 0
  %833 = vmatmul.mubr.bf16.gmra.mrb[0].mxu0 %v791
  %v834 = vpop.f32.mrb[0].mxu0
  %v835 = vadd.f32 %v762, %v834
  %v836 = vpop.f32.mrb[0].mxu0
  %v837 = vpop.f32.mrb[0].mxu0
  %v838 = vadd.f32 %v767, %v837
  %v839 = vpop.f32.mrb[0].mxu0
  %840 = vmatprep.mubr.bf16.mxu0 0
  %841 = vmatmul.mubr.bf16.gmra.mrb[0].mxu0 %v794
  %v842 = vpop.f32.mrb[0].mxu0
  %v843 = vadd.f32 %v772, %v842
  %v844 = vpop.f32.mrb[0].mxu0
  %v845 = vpop.f32.mrb[0].mxu0
  %v846 = vadd.f32 %v777, %v845
  %v847 = vpop.f32.mrb[0].mxu0
  %848 = vdwg.mxu0
  %849 = vst.msk [vmem:[%s3] sm:$0xff] %vm219, %v835
  %850 = vst.msk [vmem:[%s3 + $0x8] sm:$0xff] %vm219, %v838
  %851 = vst.msk [vmem:[%s3 + $0x10] sm:$0xff] %vm219, %v843
  %852 = vst.msk [vmem:[%s3 + $0x18] sm:$0xff] %vm219, %v846
  // Predicated region
  $region14: #{cnn_layer_forward.1} parent=0 // pred_check
    _
  $region15: #{cnn_layer_forward.1} parent=0 // pred_check_branch
    %854 = sbr.rel (0) target = $region17
  $region16: #{cnn_layer_forward.1} parent=0 // pred_region
    _
  $region17: #{cnn_layer_forward.1} parent=0 // pred_fallthru
    _
  // Predicated region
  $region18: #{cnn_layer_forward.1} parent=0 // pred_check
    _
  $region19: #{cnn_layer_forward.1} parent=0 // pred_check_branch
    %856 = sbr.rel (0) target = $region21
  $region20: #{cnn_layer_forward.1} parent=0 // pred_region
    _
  $region21: #{cnn_layer_forward.1} parent=0 // pred_fallthru
    _

</llo_original>
